<compile_context>
chip_gen: v6e
topology: v6e:2x2x1
jax: 0.10.0
libtpu: 0.0.40
codegen_flags: <defaults>
</compile_context>

<pallas_src>
import functools

import jax
import jax.numpy as jnp
from jax.experimental import pallas as pl
from jax.experimental.pallas import tpu as pltpu

_MiB = 1024 * 1024


# ----------------------------- kernel body -----------------------------------


def _norm_feat_kernel(x_ref, o_ref, *, scale, eps, native_epilogue):
    # x_ref: (tile_b, C, HW) or (1, C, tile_hw) block in VMEM.
    # Normalize each (batch, spatial) lane position over the channel axis (axis=1).
    x = x_ref[...]
    xf = x.astype(jnp.float32)
    sq_sum = jnp.sum(xf * xf, axis=1, keepdims=True)            # (tb, 1, T) f32
    # torch F.normalize: x / max(sqrt(s), eps) == x * rsqrt(max(s, eps^2)).
    # rsqrt lowers to the EUP slot -> essentially free in this mem-bound regime.
    inv = jax.lax.rsqrt(jnp.maximum(sq_sum, eps * eps))
    if native_epilogue:
        # bf16 final multiply/store (v6e/v7x): reduction + rsqrt stay in f32,
        # only the last multiply drops to the narrow dtype (halves vmul/vst work).
        o_ref[...] = x * (scale * inv).astype(o_ref.dtype)
    else:
        o_ref[...] = (xf * (scale * inv)).astype(o_ref.dtype)


# --------------------------- host-side sizing ---------------------------------


def _sublane_pad(n, dtype):
    """Round up to the sublane packing multiple (8 f32, 16 bf16, 32 int8)."""
    itemsize = jnp.dtype(dtype).itemsize
    mult = max(8, 32 // itemsize)
    return ((n + mult - 1) // mult) * mult


def _lane_pad(n):
    return ((n + 127) // 128) * 128


def _tpu_vmem_capacity_bytes():
    try:
        return int(pltpu.get_tpu_info().vmem_capacity_bytes)
    except Exception:
        return 64 * _MiB  # conservative fallback (v7x physical VMEM)


def _device_kind():
    try:
        return jax.devices()[0].device_kind.lower()
    except Exception:
        return ""


def _pick_tile_hw(HW, budget_chunks, want_steps):
    """Largest lane tile (multiple of 128) within budget; prefer divisors of HW."""
    max_chunks = max(1, min(budget_chunks, pl.cdiv(HW, 128)))
    if HW % 128 == 0:
        n = HW // 128
        for k in range(min(n, max_chunks), 0, -1):
            if n % k == 0 and (n // k) >= want_steps:
                return k * 128                      # divisor -> no ragged tail
    # Fallback: budget-clamped tile, Pallas masks the ragged tail block.
    k = max_chunks
    while k > 1 and pl.cdiv(HW, k * 128) < want_steps:
        k -= 1
    tile = k * 128
    return HW if tile >= HW else tile


# ------------------------------ wrapper ---------------------------------------


def norm_feat(x, scale_factor=1.0, eps=1e-12, max_block_bytes=None,
              vmem_limit_bytes=None, min_grid_steps=4):
    """L2-normalize `x` over axis 1 (channels) and scale, matching NormFeat.

    x: (B, C, H, W) array.
    """
    B, C, H, W = x.shape
    HW = H * W
    x3 = x.reshape(B, C, HW)                     # contiguous reshape: no HBM traffic
    dtype = x.dtype
    itemsize = jnp.dtype(dtype).itemsize

    # Generation-aware budgets: ~3/4 of physical VMEM as the scoped limit
    # (48 MiB on v7x's 64 MiB, 96 MiB on v5e/v6e's 128 MiB); the per-block
    # budget keeps the 4x pipelined footprint (double-buffered in + out)
    # comfortably inside that limit.
    vmem_capacity = _tpu_vmem_capacity_bytes()
    if vmem_limit_bytes is None:
        vmem_limit_bytes = (vmem_capacity * 3) // 4
    if max_block_bytes is None:
        max_block_bytes = max(2 * _MiB, vmem_limit_bytes // 6)   # ~8 MiB v7x, ~16 MiB v5e/v6e

    pad_c = _sublane_pad(C, dtype)
    pad_hw = _lane_pad(HW)
    per_sample_bytes = pad_c * pad_hw * itemsize                  # padded (1, C, HW) block

    kind = _device_kind()
    native_epilogue = (dtype == jnp.bfloat16
                       and not any(g in kind for g in ("v2", "v3", "v4", "v5")))

    kernel = functools.partial(_norm_feat_kernel, scale=float(scale_factor),
                               eps=float(eps), native_epilogue=native_epilogue)
    cost = pl.CostEstimate(flops=3 * B * C * HW,
                           transcendentals=B * HW,
                           bytes_accessed=2 * B * C * HW * itemsize)

    if per_sample_bytes <= max_block_bytes:
        # ---- Path A: batch tiling — move multi-MiB slabs of whole feature maps.
        tile_b = max(1, min(B, max_block_bytes // per_sample_bytes))
        if B >= 2:
            tile_b = min(tile_b, (B + 1) // 2)   # keep >= 2 grid steps (v7x: 2 TCs)
        while tile_b > 1 and B % tile_b != 0:
            tile_b -= 1                          # prefer a divisor of B: no ragged tail
        grid = (pl.cdiv(B, tile_b),)
        block = (tile_b, C, HW)
        index_map = lambda i: (i, 0, 0)
        dim_sem = ("parallel",)
    else:
        # ---- Path B: spatial tiling — (1, C, tile_hw) lane-dense blocks.
        budget_chunks = max(1, max_block_bytes // (pad_c * itemsize * 128))
        want_hw_steps = max(1, -(-min_grid_steps // B))          # ceil(min_steps / B)
        tile_hw = _pick_tile_hw(HW, budget_chunks, want_hw_steps)
        grid = (B, pl.cdiv(HW, tile_hw))
        block = (1, C, tile_hw)
        index_map = lambda b, j: (b, 0, j)
        dim_sem = ("parallel", "parallel")

    out3 = pl.pallas_call(
        kernel,
        out_shape=jax.ShapeDtypeStruct((B, C, HW), dtype),
        grid_spec=pltpu.PrefetchScalarGridSpec(
            num_scalar_prefetch=0,
            grid=grid,
            in_specs=[pl.BlockSpec(block, index_map)],
            out_specs=pl.BlockSpec(block, index_map),
        ),
        compiler_params=pltpu.CompilerParams(
            dimension_semantics=dim_sem,
            vmem_limit_bytes=int(vmem_limit_bytes),
        ),
        cost_estimate=cost,
    )(x3)

    return out3.reshape(B, C, H, W)


def _reference(x, scale_factor=1.0, eps=1e-12):
    # Pure-JAX reference mirroring torch.nn.functional.normalize(p=2, dim=1).
    norm = jnp.sqrt(jnp.sum(x.astype(jnp.float32) ** 2, axis=1, keepdims=True))
    return (scale_factor * x / jnp.maximum(norm, eps)).astype(x.dtype)


if __name__ == "__main__":
    key = jax.random.PRNGKey(0)
    scale_factor = 2.5  # deterministic "parameter" of the module

    # Primary test (module-sized input): exercises the batch-tiling path.
    B, C, H, W = 2, 4, 16, 16
    x = jax.random.normal(key, (B, C, H, W), dtype=jnp.float32)
    out = jax.block_until_ready(norm_feat(x, scale_factor=scale_factor))
    ref = _reference(x, scale_factor=scale_factor)
    assert out.shape == x.shape and out.dtype == x.dtype
    assert jnp.allclose(out, ref, atol=1e-5, rtol=1e-5), "mismatch vs reference (path A)"

    # Secondary test: force the spatial-tiling path with a tiny block budget.
    k2 = jax.random.PRNGKey(1)
    x2 = jax.random.normal(k2, (1, 8, 32, 32), dtype=jnp.float32)
    out2 = jax.block_until_ready(
        norm_feat(x2, scale_factor=scale_factor, max_block_bytes=4096))
    ref2 = _reference(x2, scale_factor=scale_factor)
    assert jnp.allclose(out2, ref2, atol=1e-5, rtol=1e-5), "mismatch vs reference (path B)"

    print("KERNEL_OK")
</pallas_src>

<mosaic_0001>
module attributes {stable_mosaic.version = 11 : i64} {
  func.func @_norm_feat_kernel(%arg0: i32, %arg1: memref<1x4x256xf32, #tpu.memory_space<vmem>>, %arg2: memref<1x4x256xf32, #tpu.memory_space<vmem>>) attributes {dimension_semantics = [#tpu.dimension_semantics<parallel>], iteration_bounds = array<i64: 2>, scalar_prefetch = 0 : i64, scratch_operands = 0 : i64, tpu.core_type = #tpu.core_type<tc>, window_params = [{transform_indices = @transform_0, window_bounds = array<i64: 1, 4, 256>}, {transform_indices = @transform_1, window_bounds = array<i64: 1, 4, 256>}]} {
    %c0 = arith.constant 0 : index
    %c0_0 = arith.constant 0 : index
    %c0_1 = arith.constant 0 : index
    %0 = vector.load %arg1[%c0, %c0_0, %c0_1] : memref<1x4x256xf32, #tpu.memory_space<vmem>>, vector<1x4x256xf32>
    %1 = arith.mulf %0, %0 : vector<1x4x256xf32>
    %cst = arith.constant dense<0.000000e+00> : vector<1x256xf32>
    %2 = vector.multi_reduction <add>, %1, %cst [1] : vector<1x4x256xf32> to vector<1x256xf32>
    %3 = vector.shape_cast %2 : vector<1x256xf32> to vector<1x1x256xf32>
    %cst_2 = arith.constant 1.000000e-24 : f32
    %4 = vector.broadcast %cst_2 : f32 to vector<1x1x256xf32>
    %5 = arith.maximumf %3, %4 : vector<1x1x256xf32>
    %6 = math.rsqrt %5 : vector<1x1x256xf32>
    %cst_3 = arith.constant 2.500000e+00 : f32
    %7 = vector.broadcast %cst_3 : f32 to vector<1x1x256xf32>
    %8 = arith.mulf %7, %6 : vector<1x1x256xf32>
    %9 = vector.broadcast %8 : vector<1x1x256xf32> to vector<1x4x256xf32>
    %10 = arith.mulf %0, %9 : vector<1x4x256xf32>
    %c0_4 = arith.constant 0 : index
    %c0_5 = arith.constant 0 : index
    %c0_6 = arith.constant 0 : index
    %11 = vector.load %arg2[%c0_4, %c0_5, %c0_6] : memref<1x4x256xf32, #tpu.memory_space<vmem>>, vector<1x4x256xf32>
    tpu.vector_store %arg2[%c0_4, %c0_5, %c0_6], %10 {strides = array<i32>} : memref<1x4x256xf32, #tpu.memory_space<vmem>>, vector<1x4x256xf32>,
    return
  }
  func.func @transform_0(%arg0: i32) -> (i32, i32, i32) {
    %c0_i32 = arith.constant 0 : i32
    %c0_i32_0 = arith.constant 0 : i32
    %c0_i32_1 = arith.constant 0 : i32
    return %arg0, %c0_i32, %c0_i32_0 : i32, i32, i32
  }
  func.func @transform_1(%arg0: i32) -> (i32, i32, i32) {
    %c0_i32 = arith.constant 0 : i32
    %c0_i32_0 = arith.constant 0 : i32
    %c0_i32_1 = arith.constant 0 : i32
    return %arg0, %c0_i32, %c0_i32_0 : i32, i32, i32
  }
}

</mosaic_0001>

<llo_original>
// kernel: tpu_custom_call.1
$region0: #{tpu_custom_call.1}
  #allocation0 [shape = 'u32[]', space=smem, size = 0x4, offset = 0x4, fixed_abs, tag = 'smem constant byte address 0x4 - core index']
  #allocation1 [shape = 'u32[144,128]{1,0:T(1,128)}', space=vmem, size = 0x12000, scoped, tag = 'internal scratch']
  %s0 = inlined_call_operand.hbm [shape: f32[2,4,256], index: 0, kind: input, shape index: {}]
  %s1 = inlined_call_operand.hbm [shape: f32[2,4,256], index: 1, kind: output, shape index: {}]
  %s2 = sld [smem:[#allocation0]]
  $region41: #{tpu_custom_call.1} parent=0
    _
  %s4 = ssub.s32 1, %s2
  %s5 = scalar_select 0, %s4, %s2
  $region1: #{tpu_custom_call.1} parent=0
    #allocation2 [shape = 'u8[8192]{0}', space=vmem, size = 0x2000, scoped, tag = 'input window, operand 0']
    #allocation3 [shape = 's32[2]{0}', space=sflag, size = 0x8, scoped, tag = 'scoped memory for tpu_custom_call.1']
    #allocation4 [shape = 's32[2]{0}', space=sflag, size = 0x8, scoped, tag = 'scoped memory for tpu_custom_call.1']
    #allocation5 [shape = 'u8[8192]{0}', space=vmem, size = 0x2000, scoped, tag = 'output window, operand 0']
    %6 = vsyncpa [#allocation3], 0
    %s7 = scalar_lea.sflag [#allocation3], 1
    %8 = vsyncpa %s7, 0
    %9 = vsyncpa [#allocation4], 0
    %s10 = scalar_lea.sflag [#allocation4], 1
    %11 = vsyncpa %s10, 0
    loop: start=0, step=1, limit=4
    $region2: #{tpu_custom_call.1} parent=1 // loop_pre_header
      _
    $region3: #{tpu_custom_call.1} parent=1 // loop_header
      %s13 = sphi 0, %s17
      %p14 = scmp.ge.s32.totalorder %s13, 4
      %s23 = sphi 0, %s25
      %s26 = sphi 0, %s23
      %s27 = sphi 0, %s26
      %s43 = sphi 0, %s27
      %s49 = sphi 0, %s51
      %s52 = sphi 0, %s49
      %s53 = sphi 0, %s52
      %s69 = sphi 0, %s53
    $region4: #{tpu_custom_call.1} parent=1 // loop_header_branch
      %16 = sbr.rel (%p14) target = $region8
    $region5: #{tpu_custom_call.1} parent=1 // loop_body
      %s18 = ssub.s32 %s13, 1
      %s19 = ssub.s32 %s13, 2
      %s20 = sadd.s32 %s13, 1
      %s21 = ssub.s32 %s13, %s20
      %p22 = scmp.eq.s32.totalorder %s21, 0
      %s24 = sadd.s32 %s23, 1
      %s25 = scalar_select %p22, %s23, %s24
      %p28 = pneg %p22
      %p29 = scmp.eq.s32.totalorder %s13, 1
      %p30 = por %p28, %p29
      %p31 = scmp.ne.s32.totalorder %s23, %s26
      %p32 = scmp.eq.s32.totalorder %s13, 0
      %p33 = por %p31, %p32
      %p34 = scmp.ne.s32.totalorder %s23, %s26
      %p35 = scmp.eq.s32.totalorder %s18, 1
      %p36 = por %p34, %p35
      %p37 = scmp.ne.s32.totalorder %s26, %s27
      %p38 = scmp.eq.s32.totalorder %s18, 0
      %p39 = por %p37, %p38
      %p40 = scmp.ne.s32.totalorder %s26, %s27
      %p41 = scmp.eq.s32.totalorder %s19, 1
      %p42 = por %p40, %p41
      %p44 = scmp.ne.s32.totalorder %s27, %s43
      %p45 = scmp.eq.s32.totalorder %s19, 0
      %p46 = por %p44, %p45
      %s47 = ssub.s32 %s13, %s20
      %p48 = scmp.eq.s32.totalorder %s47, 0
      %s50 = sadd.s32 %s49, 1
      %s51 = scalar_select %p48, %s49, %s50
      %p54 = pneg %p48
      %p55 = scmp.eq.s32.totalorder %s13, 1
      %p56 = por %p54, %p55
      %p57 = scmp.ne.s32.totalorder %s49, %s52
      %p58 = scmp.eq.s32.totalorder %s13, 0
      %p59 = por %p57, %p58
      %p60 = scmp.ne.s32.totalorder %s49, %s52
      %p61 = scmp.eq.s32.totalorder %s18, 1
      %p62 = por %p60, %p61
      %p63 = scmp.ne.s32.totalorder %s52, %s53
      %p64 = scmp.eq.s32.totalorder %s18, 0
      %p65 = por %p63, %p64
      %p66 = scmp.ne.s32.totalorder %s52, %s53
      %p67 = scmp.eq.s32.totalorder %s19, 1
      %p68 = por %p66, %p67
      %p70 = scmp.ne.s32.totalorder %s53, %s69
      %p71 = scmp.eq.s32.totalorder %s19, 0
      %p72 = por %p70, %p71
      %p73 = scmp.le.s32.totalorder 1, %s13
      %p74 = scmp.lt.s32.totalorder %s13, 3
      %p75 = pnand %p73, %p74
      %p76 = pneg %p75
      // Predicated region
      $region9: #{tpu_custom_call.1} parent=5 // pred_check
        _
      $region10: #{tpu_custom_call.1} parent=5 // pred_check_branch
        %78 = sbr.rel (%p75) target = $region12
      $region11: #{tpu_custom_call.1} parent=5 // pred_region
        %s79 = ssub.s32 %s13, 1
      $region12: #{tpu_custom_call.1} parent=5 // pred_fallthru
        _
      %p80 = scmp.lt.s32.totalorder %s13, 2
      // Predicated region
      $region13: #{tpu_custom_call.1} parent=5 // pred_check
        %p81 = pneg %p80
      $region14: #{tpu_custom_call.1} parent=5 // pred_check_branch
        %83 = sbr.rel (%p81) target = $region16
      $region15: #{tpu_custom_call.1} parent=5 // pred_region
        // Predicated region
        $region17: #{tpu_custom_call.1} parent=15 // pred_check
          %p84 = pneg %p33
        $region18: #{tpu_custom_call.1} parent=15 // pred_check_branch
          %86 = sbr.rel (%p84) target = $region20
        $region19: #{tpu_custom_call.1} parent=15 // pred_region
          %s87 = sand.u32 %s23, 1
          %s88 = scalar_lea.sflag [#allocation3], %s87
          %s89 = sand.u32 %s23, 1
          %s90 = smul.addr %s89, 8
          %s91 = scalar_lea.vmem [#allocation2], %s90
          %s93 = ssub.s32 128, 128
          %94 = vsyncadd %s88, %s93
          %s95 = smul.addr %s13, 2
          %s96 = smul.addr %s95, 64
          %s97 = scalar_lea.hbm %s0, %s96
          %s99 = sshll.u32 %s91, 4
          %s100 = int_to_ptr.vmem [resolvable:$true] %s99
          %102 = dma.hbm_to_vmem [thread:$0]  %s97, 128, %s100, %s88
        $region20: #{tpu_custom_call.1} parent=15 // pred_fallthru
          _
      $region16: #{tpu_custom_call.1} parent=5 // pred_fallthru
        _
      %p103 = scmp.le.s32.totalorder 1, %s13
      %p104 = scmp.lt.s32.totalorder %s13, 3
      %p105 = pnand %p103, %p104
      %p106 = pneg %p105
      // Predicated region
      $region21: #{tpu_custom_call.1} parent=5 // pred_check
        _
      $region22: #{tpu_custom_call.1} parent=5 // pred_check_branch
        %108 = sbr.rel (%p105) target = $region24
      $region23: #{tpu_custom_call.1} parent=5 // pred_region
        %s109 = ssub.s32 %s13, 1
        %s110 = sand.u32 %s26, 1
        %s111 = scalar_lea.sflag [#allocation3], %s110
        %s112 = sand.u32 %s26, 1
        %s113 = smul.addr %s112, 8
        %s114 = scalar_lea.vmem [#allocation2], %s113
        // Predicated region
        $region25: #{tpu_custom_call.1} parent=23 // pred_check
          %p115 = pneg %p39
        $region26: #{tpu_custom_call.1} parent=23 // pred_check_branch
          %117 = sbr.rel (%p115) target = $region28
        $region27: #{tpu_custom_call.1} parent=23 // pred_region
          %118 = dma.done %s111, 128
        $region28: #{tpu_custom_call.1} parent=23 // pred_fallthru
          _
        %s119 = sand.u32 %s26, 1
        %s120 = scalar_lea.sflag [#allocation3], %s119
        %s121 = sand.u32 %s26, 1
        %s122 = smul.addr %s121, 8
        %s123 = scalar_lea.vmem [#allocation2], %s122
        %p124 = pneg %p39
        %p125 = pneg %p36
        %p126 = pneg %p65
        %p127 = pneg %p62
        %s128 = sand.u32 %s52, 1
        %s129 = scalar_lea.sflag [#allocation4], %s128
        %s130 = sand.u32 %s52, 1
        %s131 = smul.addr %s130, 8
        %s132 = scalar_lea.vmem [#allocation5], %s131
        %v133 = vld [vmem:[%s114] sm:$0xff]
        %v134 = vmul.f32 %v133, %v133
        %v136 = vcombine.high %v134, %v134
        %vm138 = vcmask 1043456
        %v139 = vsel %vm138, %v134, 0.0
        %v140 = vrot.slane %v139, 4
        %v141 = vadd.f32 %v139, %v140
        %v142 = vrot.slane %v141, 2
        %v143 = vadd.f32 %v141, %v142
        %v144 = vrot.slane %v143, 1
        %v145 = vadd.f32 %v143, %v144
        %v146 = vsel %vm138, %v136, 0.0
        %v147 = vrot.slane %v146, 4
        %v148 = vadd.f32 %v146, %v147
        %v149 = vrot.slane %v148, 2
        %v150 = vadd.f32 %v148, %v149
        %v151 = vrot.slane %v150, 1
        %v152 = vadd.f32 %v150, %v151
        %v153 = vmax.f32 %v145, 1e-24
        %v154 = vmax.f32 %v152, 1e-24
        %v155 = vrsqrt.pop %v153
        %v156 = vrsqrt.pop %v154
        %v157 = vmul.f32 %v155, 2.5
        %v158 = vmul.f32 %v156, 2.5
        %v161 = vcombine.low %v157, %v158
        %v163 = vmul.f32 %v133, %v161
        %164 = vst [vmem:[%s132] sm:$0xff] %v163
        %s165 = sand.u32 %s52, 1
        %s166 = scalar_lea.sflag [#allocation4], %s165
        %s167 = sand.u32 %s52, 1
        %s168 = smul.addr %s167, 8
        %s169 = scalar_lea.vmem [#allocation5], %s168
        // Predicated region
        $region29: #{tpu_custom_call.1} parent=23 // pred_check
          %p170 = pneg %p62
        $region30: #{tpu_custom_call.1} parent=23 // pred_check_branch
          %172 = sbr.rel (%p170) target = $region32
        $region31: #{tpu_custom_call.1} parent=23 // pred_region
          %s174 = ssub.s32 128, 128
          %175 = vsyncadd %s166, %s174
          %s176 = smul.addr %s18, 2
          %s177 = smul.addr %s176, 64
          %s178 = scalar_lea.hbm %s1, %s177
          %s180 = sshll.u32 %s169, 4
          %s181 = int_to_ptr.vmem [resolvable:$true] %s180
          %183 = dma.vmem_to_hbm [thread:$0]  %s181, 128, %s178, %s166
        $region32: #{tpu_custom_call.1} parent=23 // pred_fallthru
          _
      $region24: #{tpu_custom_call.1} parent=5 // pred_fallthru
        _
      %p184 = scmp.le.s32.totalorder 2, %s13
      // Predicated region
      $region33: #{tpu_custom_call.1} parent=5 // pred_check
        %p185 = pneg %p184
      $region34: #{tpu_custom_call.1} parent=5 // pred_check_branch
        %187 = sbr.rel (%p185) target = $region36
      $region35: #{tpu_custom_call.1} parent=5 // pred_region
        %s188 = ssub.s32 %s13, 2
        // Predicated region
        $region37: #{tpu_custom_call.1} parent=35 // pred_check
          %p189 = pneg %p68
        $region38: #{tpu_custom_call.1} parent=35 // pred_check_branch
          %191 = sbr.rel (%p189) target = $region40
        $region39: #{tpu_custom_call.1} parent=35 // pred_region
          %s192 = sand.u32 %s53, 1
          %s193 = scalar_lea.sflag [#allocation4], %s192
          %s194 = sand.u32 %s53, 1
          %s195 = smul.addr %s194, 8
          %s196 = scalar_lea.vmem [#allocation5], %s195
          %197 = dma.done %s193, 128
        $region40: #{tpu_custom_call.1} parent=35 // pred_fallthru
          _
      $region36: #{tpu_custom_call.1} parent=5 // pred_fallthru
        _
    $region6: #{tpu_custom_call.1} parent=1 // loop_footer
      %s17 = sadd.s32 1, %s13
    $region7: #{tpu_custom_call.1} parent=1 // loop_footer_branch
      %12 = sbr.rel target = $region3
    $region8: #{tpu_custom_call.1} parent=1 // loop_exit
      _
    %198 = vsyncpa [#allocation3], 1
    %s199 = scalar_lea.sflag [#allocation3], 1
    %200 = vsyncpa %s199, 1
    %201 = vsyncpa [#allocation4], 1
    %s202 = scalar_lea.sflag [#allocation4], 1
    %203 = vsyncpa %s202, 1

</llo_original>
